<compile_context>
chip_gen: v7x
topology: tpu7x:2x2x1
jax: 0.10.0
libtpu: 0.0.40
codegen_flags: <defaults>
</compile_context>

<pallas_src>
import functools

import jax
import jax.numpy as jnp
import numpy as np
from jax.experimental import pallas as pl
from jax.experimental.pallas import tpu as pltpu


def _backproject_kernel(invk_ref, depth_ref, out_ref, *, tile_rows):
    """One grid step handles `tile_rows` image rows of one batch element.

    invk_ref : SMEM (B, 16)        float32  flattened inverse intrinsics
    depth_ref: VMEM (1, 1, TH, W)  float32  depth tile
    out_ref  : VMEM (1, 4, TH, W)  float32  homogeneous cam points tile
    """
    th = depth_ref.shape[2]
    w = depth_ref.shape[3]
    b = pl.program_id(0)
    row0 = pl.program_id(1) * tile_rows

    # Pixel coordinates generated on the fly (no HBM traffic).  x varies only
    # along lanes, y only along sublanes, so build tiny 1-D slabs and let the
    # broadcast do the per-pixel work.  (int32 -> f32 is exact for any
    # realistic image coordinate < 2^24.)
    x_row = jax.lax.broadcasted_iota(jnp.int32, (1, w), 1).astype(jnp.float32)
    y_col = (row0 + jax.lax.broadcasted_iota(jnp.int32, (th, 1), 0)).astype(
        jnp.float32)

    d = depth_ref[0, 0]  # (TH, W)

    # cam_row_c = (invK[c,0]*x + invK[c,1]*y + invK[c,2]) * depth, unrolled
    # with the x / y terms precomputed on (1,W) and (TH,1) slabs.
    for c in range(3):
        k0 = invk_ref[b, 4 * c + 0]
        k1 = invk_ref[b, 4 * c + 1]
        k2 = invk_ref[b, 4 * c + 2]
        a_lane = k0 * x_row + k2          # (1, W)
        a_sub = k1 * y_col                # (TH, 1)
        out_ref[0, c] = (a_lane + a_sub) * d

    # Homogeneous ones row, written directly (no concatenate).
    out_ref[0, 3] = jnp.ones_like(d)


def _vmem_capacity_bytes():
    try:
        return int(pltpu.get_tpu_info().vmem_capacity_bytes)
    except Exception:
        return 128 * 1024 * 1024  # v5e / v6e physical VMEM


# Double-buffered resident bytes per pixel: 4 B depth in + 16 B f32 output.
_BYTES_PER_PIXEL_RESIDENT = 2 * (4 + 16)


def _choose_tile_rows(batch, height, width, budget_bytes):
    """Largest row tile TH such that:
       * double-buffered (depth + output) tiles fit the VMEM byte budget,
       * TH divides H and TH % 8 == 0 whenever TH < H (no masked tail tile),
       * the grid keeps >= 2 steps when batch == 1 (megacore / overlap)."""
    bytes_per_row = _BYTES_PER_PIXEL_RESIDENT * max(width, 1)
    max_rows = max(1, budget_bytes // bytes_per_row)

    want_split = batch == 1
    if height <= max_rows and not want_split:
        return height

    cap = min(height, max_rows)
    if want_split:
        cap = min(cap, max(8, height // 2))

    best = None
    r = 8
    while r <= cap:
        if height % r == 0:
            best = r
        r += 8
    if best is not None:
        return best
    # Corner case (e.g. H with no multiple-of-8 divisor under the cap): fall
    # back to a single full-height tile, which is always layout-legal.
    return height


def backproject_depth(depth, inv_K):
    """depth: (B, 1, H, W) float32, inv_K: (B, 4, 4) float32
    returns cam_points: (B, 4, H*W) float32 (matches the PyTorch module)."""
    B, _, H, W = depth.shape
    depth = depth.astype(jnp.float32)
    inv_K_flat = inv_K.astype(jnp.float32).reshape(B, 16)

    vmem_cap = _vmem_capacity_bytes()
    budget = int(vmem_cap * 0.75)          # ~96 MiB on v5e/v6e, ~48 MiB on v7x
    TH = _choose_tile_rows(B, H, W, budget)
    grid = (B, pl.cdiv(H, TH))

    needed = _BYTES_PER_PIXEL_RESIDENT * TH * W
    vmem_limit = int(min(0.9 * vmem_cap, max(needed + (8 << 20), 32 << 20)))

    bytes_accessed = depth.size * 4 + B * 4 * H * W * 4 + inv_K_flat.size * 4
    cost = pl.CostEstimate(flops=9 * B * H * W, transcendentals=0,
                           bytes_accessed=bytes_accessed)

    out = pl.pallas_call(
        functools.partial(_backproject_kernel, tile_rows=TH),
        out_shape=jax.ShapeDtypeStruct((B, 4, H, W), jnp.float32),
        grid=grid,
        in_specs=[
            # Whole (B,16) inv_K resident in SMEM: no per-step DMA stream.
            pl.BlockSpec(memory_space=pltpu.MemorySpace.SMEM),
            pl.BlockSpec((1, 1, TH, W), lambda b, t: (b, 0, t, 0)),
        ],
        out_specs=pl.BlockSpec((1, 4, TH, W), lambda b, t: (b, 0, t, 0)),
        compiler_params=pltpu.CompilerParams(
            dimension_semantics=("parallel", "parallel"),
            vmem_limit_bytes=vmem_limit),
        cost_estimate=cost,
    )(inv_K_flat, depth)

    return out.reshape(B, 4, H * W)


def backproject_depth_ref(depth, inv_K, height, width):
    """Pure-JAX reference mirroring the PyTorch forward."""
    B = depth.shape[0]
    HW = height * width
    xx, yy = np.meshgrid(range(width), range(height), indexing="xy")
    pix = jnp.asarray(
        np.stack([xx.reshape(-1), yy.reshape(-1), np.ones(HW)], axis=0),
        jnp.float32)                                          # (3, HW)
    cam = jnp.einsum("bij,jk->bik", inv_K[:, :3, :3], pix)    # (B, 3, HW)
    cam = depth.reshape(B, 1, HW) * cam
    ones = jnp.ones((B, 1, HW), jnp.float32)
    return jnp.concatenate([cam, ones], axis=1)               # (B, 4, HW)


if __name__ == "__main__":
    B, H, W = 2, 16, 16
    key = jax.random.PRNGKey(0)
    kd, kk = jax.random.split(key)

    # depth map (NCHW, like the PyTorch call site)
    depth = jax.random.uniform(kd, (B, 1, H, W), jnp.float32,
                               minval=0.1, maxval=10.0)

    # deterministic, plausible inverse intrinsics (per batch)
    fx, fy = 0.58 * W, 1.92 * H
    cx, cy = 0.5 * W, 0.5 * H
    K = np.array([[fx, 0.0, cx, 0.0],
                  [0.0, fy, cy, 0.0],
                  [0.0, 0.0, 1.0, 0.0],
                  [0.0, 0.0, 0.0, 1.0]], dtype=np.float32)
    inv_K_np = np.linalg.inv(K).astype(np.float32)
    jitter = 1.0 + 0.01 * jax.random.normal(kk, (B, 1, 1), jnp.float32)
    inv_K = jnp.asarray(inv_K_np)[None].repeat(B, axis=0) * jitter

    out = backproject_depth(depth, inv_K)
    out = jax.block_until_ready(out)

    ref = backproject_depth_ref(depth, inv_K, H, W)
    assert out.shape == (B, 4, H * W)
    np.testing.assert_allclose(np.asarray(out), np.asarray(ref),
                               rtol=1e-5, atol=1e-5)
    print("KERNEL_OK")
</pallas_src>

<mosaic_0001>
module attributes {stable_mosaic.version = 11 : i64} {
  func.func @_backproject_kernel(%arg0: i32, %arg1: i32, %arg2: memref<2x16xf32, #tpu.memory_space<smem>>, %arg3: memref<1x1x16x16xf32, #tpu.memory_space<vmem>>, %arg4: memref<1x4x16x16xf32, #tpu.memory_space<vmem>>) attributes {dimension_semantics = [#tpu.dimension_semantics<parallel>, #tpu.dimension_semantics<parallel>], iteration_bounds = array<i64: 2, 1>, scalar_prefetch = 0 : i64, scratch_operands = 0 : i64, tpu.core_type = #tpu.core_type<tc>, window_params = [{transform_indices = @transform_0, window_bounds = array<i64: 2, 16>}, {transform_indices = @transform_1, window_bounds = array<i64: 1, 1, 16, 16>}, {transform_indices = @transform_2, window_bounds = array<i64: 1, 4, 16, 16>}]} {
    %c16_i32 = arith.constant 16 : i32
    %0 = arith.muli %arg1, %c16_i32 : i32
    %1 = tpu.iota {dimensions = array<i32: 1>} : vector<1x16xi32>
    %2 = arith.sitofp %1 : vector<1x16xi32> to vector<1x16xf32>
    %3 = tpu.iota {dimensions = array<i32: 0>} : vector<16x1xi32>
    %4 = vector.broadcast %0 : i32 to vector<16x1xi32>
    %5 = arith.addi %4, %3 : vector<16x1xi32>
    %6 = arith.sitofp %5 : vector<16x1xi32> to vector<16x1xf32>
    %c0 = arith.constant 0 : index
    %c0_0 = arith.constant 0 : index
    %c0_1 = arith.constant 0 : index
    %c0_2 = arith.constant 0 : index
    %7 = vector.load %arg3[%c0, %c0_0, %c0_1, %c0_2] : memref<1x1x16x16xf32, #tpu.memory_space<vmem>>, vector<1x1x16x16xf32>
    %8 = vector.shape_cast %7 : vector<1x1x16x16xf32> to vector<16x16xf32>
    %9 = arith.index_cast %arg0 : i32 to index
    %c0_3 = arith.constant 0 : index
    %10 = memref.load %arg2[%9, %c0_3] : memref<2x16xf32, #tpu.memory_space<smem>>
    %11 = arith.index_cast %arg0 : i32 to index
    %c1 = arith.constant 1 : index
    %12 = memref.load %arg2[%11, %c1] : memref<2x16xf32, #tpu.memory_space<smem>>
    %13 = arith.index_cast %arg0 : i32 to index
    %c2 = arith.constant 2 : index
    %14 = memref.load %arg2[%13, %c2] : memref<2x16xf32, #tpu.memory_space<smem>>
    %15 = vector.broadcast %10 : f32 to vector<1x16xf32>
    %16 = arith.mulf %15, %2 : vector<1x16xf32>
    %17 = vector.broadcast %14 : f32 to vector<1x16xf32>
    %18 = arith.addf %16, %17 : vector<1x16xf32>
    %19 = vector.broadcast %12 : f32 to vector<16x1xf32>
    %20 = arith.mulf %19, %6 : vector<16x1xf32>
    %21 = vector.broadcast %18 : vector<1x16xf32> to vector<16x16xf32>
    %22 = vector.broadcast %20 : vector<16x1xf32> to vector<16x16xf32>
    %23 = arith.addf %21, %22 : vector<16x16xf32>
    %24 = arith.mulf %23, %8 : vector<16x16xf32>
    %c0_4 = arith.constant 0 : index
    %c0_5 = arith.constant 0 : index
    %c0_6 = arith.constant 0 : index
    %c0_7 = arith.constant 0 : index
    %25 = vector.load %arg4[%c0_4, %c0_5, %c0_6, %c0_7] : memref<1x4x16x16xf32, #tpu.memory_space<vmem>>, vector<1x1x16x16xf32>
    %26 = vector.shape_cast %25 : vector<1x1x16x16xf32> to vector<16x16xf32>
    %27 = vector.shape_cast %24 : vector<16x16xf32> to vector<1x1x16x16xf32>
    tpu.vector_store %arg4[%c0_4, %c0_5, %c0_6, %c0_7], %27 {strides = array<i32>} : memref<1x4x16x16xf32, #tpu.memory_space<vmem>>, vector<1x1x16x16xf32>,
    %28 = arith.index_cast %arg0 : i32 to index
    %c4 = arith.constant 4 : index
    %29 = memref.load %arg2[%28, %c4] : memref<2x16xf32, #tpu.memory_space<smem>>
    %30 = arith.index_cast %arg0 : i32 to index
    %c5 = arith.constant 5 : index
    %31 = memref.load %arg2[%30, %c5] : memref<2x16xf32, #tpu.memory_space<smem>>
    %32 = arith.index_cast %arg0 : i32 to index
    %c6 = arith.constant 6 : index
    %33 = memref.load %arg2[%32, %c6] : memref<2x16xf32, #tpu.memory_space<smem>>
    %34 = vector.broadcast %29 : f32 to vector<1x16xf32>
    %35 = arith.mulf %34, %2 : vector<1x16xf32>
    %36 = vector.broadcast %33 : f32 to vector<1x16xf32>
    %37 = arith.addf %35, %36 : vector<1x16xf32>
    %38 = vector.broadcast %31 : f32 to vector<16x1xf32>
    %39 = arith.mulf %38, %6 : vector<16x1xf32>
    %40 = vector.broadcast %37 : vector<1x16xf32> to vector<16x16xf32>
    %41 = vector.broadcast %39 : vector<16x1xf32> to vector<16x16xf32>
    %42 = arith.addf %40, %41 : vector<16x16xf32>
    %43 = arith.mulf %42, %8 : vector<16x16xf32>
    %c0_8 = arith.constant 0 : index
    %c1_9 = arith.constant 1 : index
    %c0_10 = arith.constant 0 : index
    %c0_11 = arith.constant 0 : index
    %44 = vector.load %arg4[%c0_8, %c1_9, %c0_10, %c0_11] : memref<1x4x16x16xf32, #tpu.memory_space<vmem>>, vector<1x1x16x16xf32>
    %45 = vector.shape_cast %44 : vector<1x1x16x16xf32> to vector<16x16xf32>
    %46 = vector.shape_cast %43 : vector<16x16xf32> to vector<1x1x16x16xf32>
    tpu.vector_store %arg4[%c0_8, %c1_9, %c0_10, %c0_11], %46 {strides = array<i32>} : memref<1x4x16x16xf32, #tpu.memory_space<vmem>>, vector<1x1x16x16xf32>,
    %47 = arith.index_cast %arg0 : i32 to index
    %c8 = arith.constant 8 : index
    %48 = memref.load %arg2[%47, %c8] : memref<2x16xf32, #tpu.memory_space<smem>>
    %49 = arith.index_cast %arg0 : i32 to index
    %c9 = arith.constant 9 : index
    %50 = memref.load %arg2[%49, %c9] : memref<2x16xf32, #tpu.memory_space<smem>>
    %51 = arith.index_cast %arg0 : i32 to index
    %c10 = arith.constant 10 : index
    %52 = memref.load %arg2[%51, %c10] : memref<2x16xf32, #tpu.memory_space<smem>>
    %53 = vector.broadcast %48 : f32 to vector<1x16xf32>
    %54 = arith.mulf %53, %2 : vector<1x16xf32>
    %55 = vector.broadcast %52 : f32 to vector<1x16xf32>
    %56 = arith.addf %54, %55 : vector<1x16xf32>
    %57 = vector.broadcast %50 : f32 to vector<16x1xf32>
    %58 = arith.mulf %57, %6 : vector<16x1xf32>
    %59 = vector.broadcast %56 : vector<1x16xf32> to vector<16x16xf32>
    %60 = vector.broadcast %58 : vector<16x1xf32> to vector<16x16xf32>
    %61 = arith.addf %59, %60 : vector<16x16xf32>
    %62 = arith.mulf %61, %8 : vector<16x16xf32>
    %c0_12 = arith.constant 0 : index
    %c2_13 = arith.constant 2 : index
    %c0_14 = arith.constant 0 : index
    %c0_15 = arith.constant 0 : index
    %63 = vector.load %arg4[%c0_12, %c2_13, %c0_14, %c0_15] : memref<1x4x16x16xf32, #tpu.memory_space<vmem>>, vector<1x1x16x16xf32>
    %64 = vector.shape_cast %63 : vector<1x1x16x16xf32> to vector<16x16xf32>
    %65 = vector.shape_cast %62 : vector<16x16xf32> to vector<1x1x16x16xf32>
    tpu.vector_store %arg4[%c0_12, %c2_13, %c0_14, %c0_15], %65 {strides = array<i32>} : memref<1x4x16x16xf32, #tpu.memory_space<vmem>>, vector<1x1x16x16xf32>,
    %cst = arith.constant 1.000000e+00 : f32
    %66 = vector.broadcast %cst : f32 to vector<16x16xf32>
    %c0_16 = arith.constant 0 : index
    %c3 = arith.constant 3 : index
    %c0_17 = arith.constant 0 : index
    %c0_18 = arith.constant 0 : index
    %67 = vector.load %arg4[%c0_16, %c3, %c0_17, %c0_18] : memref<1x4x16x16xf32, #tpu.memory_space<vmem>>, vector<1x1x16x16xf32>
    %68 = vector.shape_cast %67 : vector<1x1x16x16xf32> to vector<16x16xf32>
    %69 = vector.shape_cast %66 : vector<16x16xf32> to vector<1x1x16x16xf32>
    tpu.vector_store %arg4[%c0_16, %c3, %c0_17, %c0_18], %69 {strides = array<i32>} : memref<1x4x16x16xf32, #tpu.memory_space<vmem>>, vector<1x1x16x16xf32>,
    return
  }
  func.func @transform_0(%arg0: i32, %arg1: i32) -> (i32, i32) {
    %c0_i32 = arith.constant 0 : i32
    %c0_i32_0 = arith.constant 0 : i32
    %c0_i32_1 = arith.constant 0 : i32
    return %c0_i32, %c0_i32_0 : i32, i32
  }
  func.func @transform_1(%arg0: i32, %arg1: i32) -> (i32, i32, i32, i32) {
    %c0_i32 = arith.constant 0 : i32
    %c0_i32_0 = arith.constant 0 : i32
    %c0_i32_1 = arith.constant 0 : i32
    return %arg0, %c0_i32, %arg1, %c0_i32_0 : i32, i32, i32, i32
  }
  func.func @transform_2(%arg0: i32, %arg1: i32) -> (i32, i32, i32, i32) {
    %c0_i32 = arith.constant 0 : i32
    %c0_i32_0 = arith.constant 0 : i32
    %c0_i32_1 = arith.constant 0 : i32
    return %arg0, %c0_i32, %arg1, %c0_i32_0 : i32, i32, i32, i32
  }
}

</mosaic_0001>

<llo_original>
// kernel: tpu_custom_call.1
$region0: #{tpu_custom_call.1}
  #allocation0 [shape = 'u32[]', space=smem, size = 0x4, offset = 0x4, fixed_abs, tag = 'smem constant byte address 0x4 - core index']
  #allocation1 [shape = 'u32[144,128]{1,0:T(1,128)}', space=vmem, size = 0x12000, scoped, tag = 'internal scratch']
  %s0 = inlined_call_operand.hbm [shape: f32[2,16], index: 0, kind: input, shape index: {}]
  %s1 = inlined_call_operand.hbm [shape: f32[2,1,16,16], index: 1, kind: input, shape index: {}]
  %s2 = inlined_call_operand.hbm [shape: f32[2,4,16,16], index: 2, kind: output, shape index: {}]
  %s3 = sld [smem:[#allocation0]]
  $region49: #{tpu_custom_call.1} parent=0
    _
  %s5 = ssub.s32 1, %s3
  %s6 = scalar_select 0, %s5, %s3
  $region1: #{tpu_custom_call.1} parent=0
    #allocation2 [shape = 'u8[1024]{0}', space=smem, size = 0x400, scoped, tag = 'input window, operand 0, single buffered']
    #allocation3 [shape = 's32[2]{0}', space=sflag, size = 0x8, scoped, tag = 'scoped memory for tpu_custom_call.1']
    #allocation4 [shape = 's32[2]{0}', space=sflag, size = 0x8, scoped, tag = 'scoped memory for tpu_custom_call.1']
    #allocation5 [shape = 's32[2]{0}', space=sflag, size = 0x8, scoped, tag = 'scoped memory for tpu_custom_call.1']
    #allocation6 [shape = 'u8[16384]{0}', space=vmem, size = 0x4000, scoped, tag = 'input window, operand 1']
    #allocation7 [shape = 'u8[65536]{0}', space=vmem, size = 0x10000, scoped, tag = 'output window, operand 0']
    %7 = vsyncpa [#allocation5], 0
    %8 = vsyncpa [#allocation3], 0
    %s9 = scalar_lea.sflag [#allocation3], 1
    %10 = vsyncpa %s9, 0
    %11 = vsyncpa [#allocation4], 0
    %s12 = scalar_lea.sflag [#allocation4], 1
    %13 = vsyncpa %s12, 0
    loop: start=0, step=1, limit=4
    $region2: #{tpu_custom_call.1} parent=1 // loop_pre_header
      _
    $region3: #{tpu_custom_call.1} parent=1 // loop_header
      %s15 = sphi 0, %s19
      %p16 = scmp.ge.s32.totalorder %s15, 4
      %s22 = sphi 0, %s34
      %s23 = sphi 0, %s30
      %s24 = sphi 0, %s22
      %s25 = sphi 0, %s23
      %s26 = sphi 0, %s24
      %s27 = sphi 0, %s25
      %s35 = sphi 0, %s35
      %s37 = sphi 0, %s35
      %s38 = sphi 0, %s37
      %s52 = sphi 0, %s38
      %s60 = sphi 0, %s62
      %s63 = sphi 0, %s60
      %s64 = sphi 0, %s63
      %s80 = sphi 0, %s64
      %s88 = sphi 0, %s90
      %s91 = sphi 0, %s88
      %s92 = sphi 0, %s91
      %s108 = sphi 0, %s92
    $region4: #{tpu_custom_call.1} parent=1 // loop_header_branch
      %18 = sbr.rel (%p16) target = $region8
    $region5: #{tpu_custom_call.1} parent=1 // loop_body
      %s20 = ssub.s32 %s15, 1
      %s21 = ssub.s32 %s15, 2
      %s28 = sadd.s32 1, %s23
      %p29 = scmp.ge.s32.totalorder %s28, 1
      %s30 = scalar_select %p29, 0, %s28
      %s31 = sadd.s32 1, %s22
      %s32 = scalar_select %p29, %s31, %s22
      %p33 = scmp.ge.s32.totalorder %s32, 2
      %s34 = scalar_select %p33, 0, %s32
      %s36 = sadd.s32 %s35, 1
      %p39 = scmp.eq.s32.totalorder %s15, 1
      %p40 = scmp.ne.s32.totalorder %s35, %s37
      %p41 = scmp.eq.s32.totalorder %s15, 0
      %p42 = por %p40, %p41
      %p43 = scmp.ne.s32.totalorder %s35, %s37
      %p44 = scmp.eq.s32.totalorder %s20, 1
      %p45 = por %p43, %p44
      %p46 = scmp.ne.s32.totalorder %s37, %s38
      %p47 = scmp.eq.s32.totalorder %s20, 0
      %p48 = por %p46, %p47
      %p49 = scmp.ne.s32.totalorder %s37, %s38
      %p50 = scmp.eq.s32.totalorder %s21, 1
      %p51 = por %p49, %p50
      %p53 = scmp.ne.s32.totalorder %s38, %s52
      %p54 = scmp.eq.s32.totalorder %s21, 0
      %p55 = por %p53, %p54
      %s56 = ssub.s32 %s22, %s34
      %s57 = ssub.s32 %s23, %s30
      %s58 = sor.u32 %s56, %s57
      %p59 = scmp.eq.s32.totalorder %s58, 0
      %s61 = sadd.s32 %s60, 1
      %s62 = scalar_select %p59, %s60, %s61
      %p65 = pneg %p59
      %p66 = scmp.eq.s32.totalorder %s15, 1
      %p67 = por %p65, %p66
      %p68 = scmp.ne.s32.totalorder %s60, %s63
      %p69 = scmp.eq.s32.totalorder %s15, 0
      %p70 = por %p68, %p69
      %p71 = scmp.ne.s32.totalorder %s60, %s63
      %p72 = scmp.eq.s32.totalorder %s20, 1
      %p73 = por %p71, %p72
      %p74 = scmp.ne.s32.totalorder %s63, %s64
      %p75 = scmp.eq.s32.totalorder %s20, 0
      %p76 = por %p74, %p75
      %p77 = scmp.ne.s32.totalorder %s63, %s64
      %p78 = scmp.eq.s32.totalorder %s21, 1
      %p79 = por %p77, %p78
      %p81 = scmp.ne.s32.totalorder %s64, %s80
      %p82 = scmp.eq.s32.totalorder %s21, 0
      %p83 = por %p81, %p82
      %s84 = ssub.s32 %s22, %s34
      %s85 = ssub.s32 %s23, %s30
      %s86 = sor.u32 %s84, %s85
      %p87 = scmp.eq.s32.totalorder %s86, 0
      %s89 = sadd.s32 %s88, 1
      %s90 = scalar_select %p87, %s88, %s89
      %p93 = pneg %p87
      %p94 = scmp.eq.s32.totalorder %s15, 1
      %p95 = por %p93, %p94
      %p96 = scmp.ne.s32.totalorder %s88, %s91
      %p97 = scmp.eq.s32.totalorder %s15, 0
      %p98 = por %p96, %p97
      %p99 = scmp.ne.s32.totalorder %s88, %s91
      %p100 = scmp.eq.s32.totalorder %s20, 1
      %p101 = por %p99, %p100
      %p102 = scmp.ne.s32.totalorder %s91, %s92
      %p103 = scmp.eq.s32.totalorder %s20, 0
      %p104 = por %p102, %p103
      %p105 = scmp.ne.s32.totalorder %s91, %s92
      %p106 = scmp.eq.s32.totalorder %s21, 1
      %p107 = por %p105, %p106
      %p109 = scmp.ne.s32.totalorder %s92, %s108
      %p110 = scmp.eq.s32.totalorder %s21, 0
      %p111 = por %p109, %p110
      %p112 = scmp.le.s32.totalorder 1, %s15
      %p113 = scmp.lt.s32.totalorder %s15, 3
      %p114 = pnand %p112, %p113
      %p115 = pneg %p114
      // Predicated region
      $region9: #{tpu_custom_call.1} parent=5 // pred_check
        _
      $region10: #{tpu_custom_call.1} parent=5 // pred_check_branch
        %117 = sbr.rel (%p114) target = $region12
      $region11: #{tpu_custom_call.1} parent=5 // pred_region
        %s118 = ssub.s32 %s15, 1
        // Predicated region
        $region13: #{tpu_custom_call.1} parent=11 // pred_check
          %p119 = pneg %p48
        $region14: #{tpu_custom_call.1} parent=11 // pred_check_branch
          %121 = sbr.rel (%p119) target = $region16
        $region15: #{tpu_custom_call.1} parent=11 // pred_region
          %s123 = ssub.s32 32, 32
          %124 = vsyncadd [#allocation5], %s123
          %127 = dma.hbm_to_smem %s0, 32, [#allocation2], [#allocation5]
        $region16: #{tpu_custom_call.1} parent=11 // pred_fallthru
          _
      $region12: #{tpu_custom_call.1} parent=5 // pred_fallthru
        _
      %p128 = scmp.lt.s32.totalorder %s15, 2
      // Predicated region
      $region17: #{tpu_custom_call.1} parent=5 // pred_check
        %p129 = pneg %p128
      $region18: #{tpu_custom_call.1} parent=5 // pred_check_branch
        %131 = sbr.rel (%p129) target = $region20
      $region19: #{tpu_custom_call.1} parent=5 // pred_region
        // Predicated region
        $region21: #{tpu_custom_call.1} parent=19 // pred_check
          %p132 = pneg %p70
        $region22: #{tpu_custom_call.1} parent=19 // pred_check_branch
          %134 = sbr.rel (%p132) target = $region24
        $region23: #{tpu_custom_call.1} parent=19 // pred_region
          %s135 = sand.u32 %s60, 1
          %s136 = scalar_lea.sflag [#allocation3], %s135
          %s137 = sand.u32 %s60, 1
          %s138 = smul.addr %s137, 16
          %s139 = scalar_lea.vmem [#allocation6], %s138
          %s140 = smul.u32 2, %s23
          %s142 = ssub.s32 256, 256
          %143 = vsyncadd %s136, %s142
          %s144 = smul.addr %s22, 2
          %s145 = sadd.s32 %s140, %s144
          %s146 = smul.addr %s145, 128
          %s147 = scalar_lea.hbm %s1, %s146
          %s148 = sshll.u32 %s139, 4
          %s149 = int_to_ptr.vmem [resolvable:$true] %s148
          %154 = dma.hbm_to_vmem [thread:$0]  %s147, 256, %s149, %s136, 128, 128, 8
        $region24: #{tpu_custom_call.1} parent=19 // pred_fallthru
          _
      $region20: #{tpu_custom_call.1} parent=5 // pred_fallthru
        _
      %p155 = scmp.le.s32.totalorder 1, %s15
      %p156 = scmp.lt.s32.totalorder %s15, 3
      %p157 = pnand %p155, %p156
      %p158 = pneg %p157
      // Predicated region
      $region25: #{tpu_custom_call.1} parent=5 // pred_check
        _
      $region26: #{tpu_custom_call.1} parent=5 // pred_check_branch
        %160 = sbr.rel (%p157) target = $region28
      $region27: #{tpu_custom_call.1} parent=5 // pred_region
        %s161 = ssub.s32 %s15, 1
        // Predicated region
        $region29: #{tpu_custom_call.1} parent=27 // pred_check
          %p162 = pneg %p48
        $region30: #{tpu_custom_call.1} parent=27 // pred_check_branch
          %164 = sbr.rel (%p162) target = $region32
        $region31: #{tpu_custom_call.1} parent=27 // pred_region
          %165 = dma.done [#allocation5], 32
        $region32: #{tpu_custom_call.1} parent=27 // pred_fallthru
          _
        %s166 = sand.u32 %s63, 1
        %s167 = scalar_lea.sflag [#allocation3], %s166
        %s168 = sand.u32 %s63, 1
        %s169 = smul.addr %s168, 16
        %s170 = scalar_lea.vmem [#allocation6], %s169
        // Predicated region
        $region33: #{tpu_custom_call.1} parent=27 // pred_check
          %p171 = pneg %p76
        $region34: #{tpu_custom_call.1} parent=27 // pred_check_branch
          %173 = sbr.rel (%p171) target = $region36
        $region35: #{tpu_custom_call.1} parent=27 // pred_region
          %174 = dma.done %s167, 256
        $region36: #{tpu_custom_call.1} parent=27 // pred_fallthru
          _
        %175 = sfence
        %p176 = pneg %p48
        %p177 = pneg %p45
        %s178 = sand.u32 %s63, 1
        %s179 = scalar_lea.sflag [#allocation3], %s178
        %s180 = sand.u32 %s63, 1
        %s181 = smul.addr %s180, 16
        %s182 = scalar_lea.vmem [#allocation6], %s181
        %p183 = pneg %p76
        %p184 = pneg %p73
        %p185 = pneg %p104
        %p186 = pneg %p101
        %s187 = sand.u32 %s91, 1
        %s188 = scalar_lea.sflag [#allocation4], %s187
        %s189 = sand.u32 %s91, 1
        %s190 = smul.addr %s189, 64
        %s191 = scalar_lea.vmem [#allocation7], %s190
        %s192 = smul.u32 2, %s25
        %s193 = smul.u32 2, %s25
        %s194 = smul.u32 %s25, 16
        %v195 = vlaneseq
        %v196 = vand.u32 %v195, 127
        %v197 = vcvt.s32.f32 %v196
        %v198 = vlaneseq
        %v199 = vshrl.u32 %v198, 7
        %v200 = vadd.s32 %v199, 8
        %v201 = vstv %s194
        %v202 = vadd.s32 %v201, %v199
        %v203 = vadd.s32 %v201, %v200
        %v204 = vcvt.s32.f32 %v202
        %v205 = vcvt.s32.f32 %v203
        %v206 = vld [vmem:[%s170] sm:$0xff]
        %v207 = vld [vmem:[%s170 + $0x8] sm:$0xff]
        %s208 = smul.u32 %s24, 128
        %s209 = sld [smem:[#allocation2 + %s208]]
        %s210 = sadd.s32 %s208, 1
        %s211 = sld [smem:[#allocation2 + %s210]]
        %s212 = sadd.s32 %s208, 2
        %s213 = sld [smem:[#allocation2 + %s212]]
        %v214 = vstv %s209
        %v215 = vmul.f32 %v214, %v197
        %v216 = vstv %s213
        %v217 = vadd.f32 %v215, %v216
        %v218 = vstv %s211
        %v219 = vmul.f32 %v218, %v204
        %v220 = vmul.f32 %v218, %v205
        %v221 = vadd.f32 %v217, %v219
        %v222 = vadd.f32 %v217, %v220
        %v223 = vmul.f32 %v221, %v206
        %v224 = vmul.f32 %v222, %v207
        %vm225 = vcmask 130048
        %226 = vst.msk [vmem:[%s191] sm:$0xff] %vm225, %v223
        %227 = vst.msk [vmem:[%s191 + $0x8] sm:$0xff] %vm225, %v224
        %s228 = sadd.s32 %s208, 4
        %s229 = sld [smem:[#allocation2 + %s228]]
        %s230 = sadd.s32 %s208, 5
        %s231 = sld [smem:[#allocation2 + %s230]]
        %s232 = sadd.s32 %s208, 6
        %s233 = sld [smem:[#allocation2 + %s232]]
        %v234 = vstv %s229
        %v235 = vmul.f32 %v234, %v197
        %v236 = vstv %s233
        %v237 = vadd.f32 %v235, %v236
        %v238 = vstv %s231
        %v239 = vmul.f32 %v238, %v204
        %v240 = vmul.f32 %v238, %v205
        %v241 = vadd.f32 %v237, %v239
        %v242 = vadd.f32 %v237, %v240
        %v243 = vmul.f32 %v241, %v206
        %v244 = vmul.f32 %v242, %v207
        %s245 = scalar_lea.vmem %s191, 16 [#allocation7]
        %246 = vst.msk [vmem:[%s245] sm:$0xff] %vm225, %v243
        %247 = vst.msk [vmem:[%s245 + $0x8] sm:$0xff] %vm225, %v244
        %s248 = sadd.s32 %s208, 8
        %s249 = sld [smem:[#allocation2 + %s248]]
        %s250 = sadd.s32 %s208, 9
        %s251 = sld [smem:[#allocation2 + %s250]]
        %s252 = sadd.s32 %s208, 10
        %s253 = sld [smem:[#allocation2 + %s252]]
        %v254 = vstv %s249
        %v255 = vmul.f32 %v254, %v197
        %v256 = vstv %s253
        %v257 = vadd.f32 %v255, %v256
        %v258 = vstv %s251
        %v259 = vmul.f32 %v258, %v204
        %v260 = vmul.f32 %v258, %v205
        %v261 = vadd.f32 %v257, %v259
        %v262 = vadd.f32 %v257, %v260
        %v263 = vmul.f32 %v261, %v206
        %v264 = vmul.f32 %v262, %v207
        %s265 = scalar_lea.vmem %s191, 32 [#allocation7]
        %266 = vst.msk [vmem:[%s265] sm:$0xff] %vm225, %v263
        %267 = vst.msk [vmem:[%s265 + $0x8] sm:$0xff] %vm225, %v264
        %s268 = scalar_lea.vmem %s191, 48 [#allocation7]
        %269 = vst.msk [vmem:[%s268] sm:$0xff] %vm225, 1.0
        %270 = vst.msk [vmem:[%s268 + $0x8] sm:$0xff] %vm225, 1.0
        %s271 = sand.u32 %s91, 1
        %s272 = scalar_lea.sflag [#allocation4], %s271
        %s273 = sand.u32 %s91, 1
        %s274 = smul.addr %s273, 64
        %s275 = scalar_lea.vmem [#allocation7], %s274
        // Predicated region
        $region37: #{tpu_custom_call.1} parent=27 // pred_check
          %p276 = pneg %p101
        $region38: #{tpu_custom_call.1} parent=27 // pred_check_branch
          %278 = sbr.rel (%p276) target = $region40
        $region39: #{tpu_custom_call.1} parent=27 // pred_region
          %s279 = smul.u32 2, %s25
          %s281 = ssub.s32 1024, 1024
          %282 = vsyncadd %s272, %s281
          %s283 = smul.addr %s24, 8
          %s284 = sadd.s32 %s279, %s283
          %s285 = smul.addr %s284, 128
          %s286 = scalar_lea.hbm %s2, %s285
          %s287 = sshll.u32 %s275, 4
          %s288 = int_to_ptr.vmem [resolvable:$true] %s287
          %293 = dma.vmem_to_hbm [thread:$0]  %s288, 1024, %s286, %s272, 128, 128, 8
        $region40: #{tpu_custom_call.1} parent=27 // pred_fallthru
          _
      $region28: #{tpu_custom_call.1} parent=5 // pred_fallthru
        _
      %p294 = scmp.le.s32.totalorder 2, %s15
      // Predicated region
      $region41: #{tpu_custom_call.1} parent=5 // pred_check
        %p295 = pneg %p294
      $region42: #{tpu_custom_call.1} parent=5 // pred_check_branch
        %297 = sbr.rel (%p295) target = $region44
      $region43: #{tpu_custom_call.1} parent=5 // pred_region
        %s298 = ssub.s32 %s15, 2
        // Predicated region
        $region45: #{tpu_custom_call.1} parent=43 // pred_check
          %p299 = pneg %p107
        $region46: #{tpu_custom_call.1} parent=43 // pred_check_branch
          %301 = sbr.rel (%p299) target = $region48
        $region47: #{tpu_custom_call.1} parent=43 // pred_region
          %s302 = sand.u32 %s92, 1
          %s303 = scalar_lea.sflag [#allocation4], %s302
          %s304 = sand.u32 %s92, 1
          %s305 = smul.addr %s304, 64
          %s306 = scalar_lea.vmem [#allocation7], %s305
          %307 = dma.done %s303, 1024
        $region48: #{tpu_custom_call.1} parent=43 // pred_fallthru
          _
      $region44: #{tpu_custom_call.1} parent=5 // pred_fallthru
        _
    $region6: #{tpu_custom_call.1} parent=1 // loop_footer
      %s19 = sadd.s32 1, %s15
    $region7: #{tpu_custom_call.1} parent=1 // loop_footer_branch
      %14 = sbr.rel target = $region3
    $region8: #{tpu_custom_call.1} parent=1 // loop_exit
      _
    %308 = vsyncpa [#allocation3], 1
    %s309 = scalar_lea.sflag [#allocation3], 1
    %310 = vsyncpa %s309, 1
    %311 = vsyncpa [#allocation4], 1
    %s312 = scalar_lea.sflag [#allocation4], 1
    %313 = vsyncpa %s312, 1
    %314 = vsyncpa [#allocation5], 1
    %s315 = scalar_lea.sflag [#allocation5], 1
    %316 = vsyncpa %s315, 1

</llo_original>
